<compile_context>
chip_gen: v7x
topology: tpu7x:2x2x1
jax: 0.10.0
libtpu: 0.0.40
codegen_flags: <defaults>
</compile_context>

<pallas_src>
import jax
import jax.numpy as jnp
from jax.experimental import pallas as pl
from jax.experimental.pallas import tpu as pltpu


def rlinear_kernel(x_ref, w_ref, b_ref, o_ref):
    # x_ref: [S, Nt]   w_ref: [P, S]   b_ref: [P, 1]   o_ref: [P, Nt]
    x = x_ref[...]
    xf = x.astype(jnp.float32)

    # Per-lane (= per (batch, channel)) stats over the time axis (sublane reduce).
    mean = jnp.mean(xf, axis=0, keepdims=True)               # [1, Nt]
    xc_f = xf - mean                                         # [S, Nt]
    var = jnp.mean(xc_f * xc_f, axis=0, keepdims=True)       # unbiased=False
    stdev = jnp.sqrt(var + 1e-5)                             # [1, Nt]

    # Matmul operands in the native input dtype (full-rate MXU for bf16),
    # f32 accumulation.  Folded de-norm: W @ xc + bias*stdev + mean.
    xc = xc_f.astype(x_ref.dtype)
    y = jnp.dot(w_ref[...], xc, preferred_element_type=jnp.float32)   # [P, Nt]
    y = y + b_ref[...].astype(jnp.float32) * stdev + mean
    o_ref[...] = y.astype(o_ref.dtype)


def rlinear_forward(x_enc, weight, bias):
    """x_enc: [B, S, C]; weight: [P, S]; bias: [P] -> [B, P, C]."""
    B, S, C = x_enc.shape
    P = weight.shape[0]
    N = B * C
    itemsize = jnp.dtype(x_enc.dtype).itemsize

    # Layout plumbing (outside the kernel): [B,S,C] -> [S, B*C].
    x2d = jnp.transpose(x_enc, (1, 0, 2)).reshape(S, N)
    bias2d = bias.reshape(P, 1)

    # --- per-generation VMEM-aware lane-tile sizing ---------------------------
    try:
        vmem_cap = pltpu.get_tpu_info().vmem_capacity_bytes   # 128 MiB v5e/v6e, 64 MiB v7x
    except Exception:
        vmem_cap = 64 << 20                                   # conservative fallback
    vmem_limit = min(vmem_cap // 2, 64 << 20)

    # Bytes per lane column: double-buffered x tile + double-buffered out tile
    # (input dtype) plus f32 intermediates (xc, y).  Leave headroom for the
    # resident weight and pipeline bookkeeping.
    per_lane = (S + P) * (2 * itemsize + 4)
    budget = vmem_limit // 3
    lane_cap = max(128, min(2048, (budget // per_lane) // 128 * 128))

    if N % 128 == 0:
        target = min(lane_cap, N)
        if N >= 256:
            # Prefer >=2 grid steps so both v7x TensorCores get work.
            target = min(target, max(128, (N // 2) // 128 * 128))
        Nt = 128
        for cand in range(target, 127, -128):
            if N % cand == 0:          # Nt always divides N -> no dropped channels
                Nt = cand
                break
    else:
        # Full-extent lane block always satisfies the (8,128) BlockSpec rule.
        Nt = N

    grid = (N // Nt,)

    cost = pl.CostEstimate(
        flops=2 * P * S * N,
        transcendentals=0,
        bytes_accessed=(S * N + P * N) * itemsize
        + (P * S + P) * jnp.dtype(weight.dtype).itemsize,
    )

    out2d = pl.pallas_call(
        rlinear_kernel,
        out_shape=jax.ShapeDtypeStruct((P, N), x_enc.dtype),
        grid_spec=pltpu.PrefetchScalarGridSpec(
            num_scalar_prefetch=0,
            grid=grid,
            in_specs=[
                pl.BlockSpec((S, Nt), lambda i: (0, i)),      # x tile
                pl.BlockSpec((P, S), lambda i: (0, 0)),       # weight, resident
                pl.BlockSpec((P, 1), lambda i: (0, 0)),       # bias, resident
            ],
            out_specs=pl.BlockSpec((P, Nt), lambda i: (0, i)),
        ),
        compiler_params=pltpu.CompilerParams(
            dimension_semantics=("parallel",),
            vmem_limit_bytes=vmem_limit,
        ),
        cost_estimate=cost,
    )(x2d, weight, bias2d)

    # [P, B*C] -> [B, P, C]
    return jnp.transpose(out2d.reshape(P, B, C), (1, 0, 2))


def reference_forward(x_enc, weight, bias):
    means = jnp.mean(x_enc, axis=1, keepdims=True)
    xc = x_enc - means
    stdev = jnp.sqrt(jnp.var(xc, axis=1, keepdims=True) + 1e-5)
    xn = xc / stdev
    dec = jnp.einsum("bsc,ps->bpc", xn, weight) + bias[None, :, None]
    dec = dec * stdev[:, 0, :][:, None, :] + means[:, 0, :][:, None, :]
    return dec


def _run_case(key, B, S, P, C):
    kx, kw, kb = jax.random.split(key, 3)
    x_enc = jax.random.normal(kx, (B, S, C), dtype=jnp.float32)
    bound = 1.0 / (S ** 0.5)
    weight = jax.random.uniform(kw, (P, S), minval=-bound, maxval=bound, dtype=jnp.float32)
    bias = jax.random.uniform(kb, (P,), minval=-bound, maxval=bound, dtype=jnp.float32)

    out = jax.block_until_ready(rlinear_forward(x_enc, weight, bias))
    ref = reference_forward(x_enc, weight, bias)
    assert out.shape == (B, P, C)
    assert jnp.allclose(out, ref, atol=1e-4, rtol=1e-4)


if __name__ == "__main__":
    key = jax.random.PRNGKey(0)
    k1, k2 = jax.random.split(key)

    # Small shape consistent with the module (B*C not a multiple of 128 -> full-extent block).
    _run_case(k1, B=2, S=8, P=8, C=32)
    # Shape exercising the lane-tiled path (B*C = 256 -> Nt = 128, 2 grid steps).
    _run_case(k2, B=4, S=16, P=24, C=64)

    print("KERNEL_OK")
</pallas_src>

<mosaic_0001>
module attributes {stable_mosaic.version = 11 : i64} {
  func.func @rlinear_kernel(%arg0: i32, %arg1: memref<8x64xf32, #tpu.memory_space<vmem>>, %arg2: memref<8x8xf32, #tpu.memory_space<vmem>>, %arg3: memref<8x1xf32, #tpu.memory_space<vmem>>, %arg4: memref<8x64xf32, #tpu.memory_space<vmem>>) attributes {dimension_semantics = [#tpu.dimension_semantics<parallel>], iteration_bounds = array<i64: 1>, scalar_prefetch = 0 : i64, scratch_operands = 0 : i64, tpu.core_type = #tpu.core_type<tc>, window_params = [{transform_indices = @transform_0, window_bounds = array<i64: 8, 64>}, {pipeline_mode = #tpu.pipeline_mode<synchronous>, transform_indices = @transform_1, window_bounds = array<i64: 8, 8>}, {pipeline_mode = #tpu.pipeline_mode<synchronous>, transform_indices = @transform_2, window_bounds = array<i64: 8, 1>}, {transform_indices = @transform_3, window_bounds = array<i64: 8, 64>}]} {
    %c0 = arith.constant 0 : index
    %c0_0 = arith.constant 0 : index
    %0 = vector.load %arg1[%c0, %c0_0] : memref<8x64xf32, #tpu.memory_space<vmem>>, vector<8x64xf32>
    %cst = arith.constant dense<0.000000e+00> : vector<64xf32>
    %1 = vector.multi_reduction <add>, %0, %cst [0] : vector<8x64xf32> to vector<64xf32>
    %2 = vector.shape_cast %1 : vector<64xf32> to vector<1x64xf32>
    %cst_1 = arith.constant 8.000000e+00 : f32
    %3 = vector.broadcast %cst_1 : f32 to vector<1x64xf32>
    %4 = arith.divf %2, %3 : vector<1x64xf32>
    %5 = vector.broadcast %4 : vector<1x64xf32> to vector<8x64xf32>
    %6 = arith.subf %0, %5 : vector<8x64xf32>
    %7 = arith.mulf %6, %6 : vector<8x64xf32>
    %cst_2 = arith.constant dense<0.000000e+00> : vector<64xf32>
    %8 = vector.multi_reduction <add>, %7, %cst_2 [0] : vector<8x64xf32> to vector<64xf32>
    %9 = vector.shape_cast %8 : vector<64xf32> to vector<1x64xf32>
    %cst_3 = arith.constant 8.000000e+00 : f32
    %10 = vector.broadcast %cst_3 : f32 to vector<1x64xf32>
    %11 = arith.divf %9, %10 : vector<1x64xf32>
    %cst_4 = arith.constant 9.99999974E-6 : f32
    %12 = vector.broadcast %cst_4 : f32 to vector<1x64xf32>
    %13 = arith.addf %11, %12 : vector<1x64xf32>
    %14 = math.sqrt %13 : vector<1x64xf32>
    %c0_5 = arith.constant 0 : index
    %c0_6 = arith.constant 0 : index
    %15 = vector.load %arg2[%c0_5, %c0_6] : memref<8x8xf32, #tpu.memory_space<vmem>>, vector<8x8xf32>
    %cst_7 = arith.constant dense<0.000000e+00> : vector<8x64xf32>
    %16 = tpu.matmul %15, %6, %cst_7 {dimension_numbers = #tpu.dot_dimension_numbers<[1], [0], [0], [1], [0, 0, 1, 1], [], []>} : vector<8x8xf32>, vector<8x64xf32>, vector<8x64xf32> -> vector<8x64xf32>
    %c0_8 = arith.constant 0 : index
    %c0_9 = arith.constant 0 : index
    %17 = vector.load %arg3[%c0_8, %c0_9] : memref<8x1xf32, #tpu.memory_space<vmem>>, vector<8x1xf32>
    %18 = vector.broadcast %17 : vector<8x1xf32> to vector<8x64xf32>
    %19 = vector.broadcast %14 : vector<1x64xf32> to vector<8x64xf32>
    %20 = arith.mulf %18, %19 : vector<8x64xf32>
    %21 = arith.addf %16, %20 : vector<8x64xf32>
    %22 = vector.broadcast %4 : vector<1x64xf32> to vector<8x64xf32>
    %23 = arith.addf %21, %22 : vector<8x64xf32>
    %c0_10 = arith.constant 0 : index
    %c0_11 = arith.constant 0 : index
    %24 = vector.load %arg4[%c0_10, %c0_11] : memref<8x64xf32, #tpu.memory_space<vmem>>, vector<8x64xf32>
    tpu.vector_store %arg4[%c0_10, %c0_11], %23 {strides = array<i32>} : memref<8x64xf32, #tpu.memory_space<vmem>>, vector<8x64xf32>,
    return
  }
  func.func @transform_0(%arg0: i32) -> (i32, i32) {
    %c0_i32 = arith.constant 0 : i32
    %c0_i32_0 = arith.constant 0 : i32
    return %c0_i32, %arg0 : i32, i32
  }
  func.func @transform_1(%arg0: i32) -> (i32, i32) {
    %c0_i32 = arith.constant 0 : i32
    %c0_i32_0 = arith.constant 0 : i32
    %c0_i32_1 = arith.constant 0 : i32
    return %c0_i32, %c0_i32_0 : i32, i32
  }
  func.func @transform_2(%arg0: i32) -> (i32, i32) {
    %c0_i32 = arith.constant 0 : i32
    %c0_i32_0 = arith.constant 0 : i32
    %c0_i32_1 = arith.constant 0 : i32
    return %c0_i32, %c0_i32_0 : i32, i32
  }
  func.func @transform_3(%arg0: i32) -> (i32, i32) {
    %c0_i32 = arith.constant 0 : i32
    %c0_i32_0 = arith.constant 0 : i32
    return %c0_i32, %arg0 : i32, i32
  }
}

</mosaic_0001>

<llo_original>
// kernel: tpu_custom_call.1
$region0: #{tpu_custom_call.1}
  #allocation0 [shape = 'u32[]', space=smem, size = 0x4, offset = 0x4, fixed_abs, tag = 'smem constant byte address 0x4 - core index']
  #allocation1 [shape = 'u32[144,128]{1,0:T(1,128)}', space=vmem, size = 0x12000, scoped, tag = 'internal scratch']
  %s0 = inlined_call_operand.vmem [shape: f32[8,64], index: 0, kind: input, shape index: {}]
  %s1 = inlined_call_operand.hbm [shape: f32[8,8], index: 1, kind: input, shape index: {}]
  %s2 = inlined_call_operand.vmem [shape: f32[8,1], index: 2, kind: input, shape index: {}]
  %s3 = inlined_call_operand.hbm [shape: f32[8,64], index: 3, kind: output, shape index: {}]
  %s4 = sld [smem:[#allocation0]]
  $region26: #{tpu_custom_call.1} parent=0
    _
  %s6 = ssub.s32 1, %s4
  %s7 = scalar_select 0, %s6, %s4
  $region1: #{tpu_custom_call.1} parent=0
    #allocation2 [shape = 'u8[4096]{0}', space=vmem, size = 0x1000, scoped, tag = 'input window, operand 1, single buffered']
    #allocation3 [shape = 's32[1]{0}', space=sflag, size = 0x4, scoped, tag = 'scoped memory for tpu_custom_call.1']
    #allocation4 [shape = 's32[1]{0}', space=sflag, size = 0x4, scoped, tag = 'scoped memory for tpu_custom_call.1']
    #allocation5 [shape = 'u8[4096]{0}', space=vmem, size = 0x1000, scoped, tag = 'output window, operand 0, single buffered']
    %8 = vsyncpa [#allocation3], 0
    %9 = vsyncpa [#allocation4], 0
    // Predicated region
    $region2: #{tpu_custom_call.1} parent=1 // pred_check
      _
    $region3: #{tpu_custom_call.1} parent=1 // pred_check_branch
      %11 = sbr.rel (0) target = $region5
    $region4: #{tpu_custom_call.1} parent=1 // pred_region
      _
    $region5: #{tpu_custom_call.1} parent=1 // pred_fallthru
      _
    // Predicated region
    $region6: #{tpu_custom_call.1} parent=1 // pred_check
      _
    $region7: #{tpu_custom_call.1} parent=1 // pred_check_branch
      %13 = sbr.rel (0) target = $region9
    $region8: #{tpu_custom_call.1} parent=1 // pred_region
      %s15 = ssub.s32 128, 128
      %16 = vsyncadd [#allocation3], %s15
      %s18 = sshll.u32 [#allocation2], 4
      %s19 = int_to_ptr.vmem [resolvable:$true] %s18
      %21 = dma.hbm_to_vmem [thread:$0]  %s1, 128, %s19, [#allocation3]
    $region9: #{tpu_custom_call.1} parent=1 // pred_fallthru
      _
    // Predicated region
    $region10: #{tpu_custom_call.1} parent=1 // pred_check
      _
    $region11: #{tpu_custom_call.1} parent=1 // pred_check_branch
      %23 = sbr.rel (0) target = $region13
    $region12: #{tpu_custom_call.1} parent=1 // pred_region
      _
    $region13: #{tpu_custom_call.1} parent=1 // pred_fallthru
      _
    // Predicated region
    $region14: #{tpu_custom_call.1} parent=1 // pred_check
      _
    $region15: #{tpu_custom_call.1} parent=1 // pred_check_branch
      %25 = sbr.rel (0) target = $region17
    $region16: #{tpu_custom_call.1} parent=1 // pred_region
      %26 = dma.done [#allocation3], 128
    $region17: #{tpu_custom_call.1} parent=1 // pred_fallthru
      _
    %v27 = vld [vmem:[%s0] sm:$0xff]
    %vm28 = vcmask 523264
    %v29 = vsel %vm28, %v27, 0.0
    %v30 = vrot.slane %v29, 4
    %v31 = vadd.f32 %v29, %v30
    %v32 = vrot.slane %v31, 2
    %v33 = vadd.f32 %v31, %v32
    %v34 = vrot.slane %v33, 1
    %v35 = vadd.f32 %v33, %v34
    %v36 = vrcp.pop 8.0
    %v37 = vmul.f32 %v35, %v36
    %v38 = vsub.f32 %v27, %v37
    %v39 = vmul.f32 %v38, %v38
    %v40 = vsel %vm28, %v39, 0.0
    %v41 = vrot.slane %v40, 4
    %v42 = vadd.f32 %v40, %v41
    %v43 = vrot.slane %v42, 2
    %v44 = vadd.f32 %v42, %v43
    %v45 = vrot.slane %v44, 1
    %v46 = vadd.f32 %v44, %v45
    %v47 = vmul.f32 %v46, %v36
    %v48 = vadd.f32 %v47, 1e-05
    %v49 = vrsqrt.pop %v48
    %v50 = vmul.f32 %v48, %v49
    %vm51 = vcmp.eq.f32.partialorder %v48, inf
    %v52 = vsel %vm51, %v48, %v50
    %vm53 = vcmp.eq.f32.partialorder %v48, 0.0
    %v54 = vand.u32 %v48, 2147483648
    %v55 = vsel %vm53, %v54, %v52
    %v56 = vld [vmem:[#allocation2] sm:$0xff]
    %v57 = vld [vmem:[%s2] sm:$0xff]
    %59 = vset.pattern.permute.xlu0 0
    %60 = vperm.xlu0 %59, %v57
    %v61 = vpop.permute.xlu0 %60
    %v63 = vmul.f32 %v61, %v55
    %vm64 = vcmask 64512
    %v66 = vsel %vm64, %v56, 0
    %68 = vmatprep.subr.mxu0 0.0
    %69 = vmatpush1.msra.mxu0 %v38
    %70 = vmatprep.subr.mxu0 0.0
    %71 = vmatpush1.msra.mxu0 0.0
    %72 = vmatprep.subr.mxu0 0.0
    %73 = vmatpush1.msra.mxu0 0.0
    %74 = vmatprep.subr.mxu0 0.0
    %75 = vmatpush1.msra.mxu0 0.0
    %76 = vmatprep.subr.mxu0 0.0
    %77 = vmatpush1.msra.mxu0 0.0
    %78 = vmatprep.subr.mxu0 0.0
    %79 = vmatpush1.msra.mxu0 0.0
    %80 = vmatprep.subr.mxu0 0.0
    %81 = vmatpush1.msra.mxu0 0.0
    %82 = vmatprep.subr.mxu0 0.0
    %83 = vmatpush1.msra.mxu0 0.0
    %84 = vmatprep.subr.mxu0 0.0
    %85 = vmatpush1.msra.mxu0 0.0
    %86 = vmatprep.subr.mxu0 0.0
    %87 = vmatpush1.msra.mxu0 0.0
    %88 = vmatprep.subr.mxu0 0.0
    %89 = vmatpush1.msra.mxu0 0.0
    %90 = vmatprep.subr.mxu0 0.0
    %91 = vmatpush1.msra.mxu0 0.0
    %92 = vmatprep.subr.mxu0 0.0
    %93 = vmatpush1.msra.mxu0 0.0
    %94 = vmatprep.subr.mxu0 0.0
    %95 = vmatpush1.msra.mxu0 0.0
    %96 = vmatprep.subr.mxu0 0.0
    %97 = vmatpush1.msra.mxu0 0.0
    %98 = vmatprep.subr.mxu0 0.0
    %99 = vmatpush1.msra.mxu0 0.0
    %100 = vmatprep.subr.mxu0 0.0
    %101 = vmatpush1.msra.mxu0 0.0
    %102 = vmatprep.subr.mxu0 0.0
    %103 = vmatpush1.msra.mxu0 0.0
    %104 = vmatprep.subr.mxu0 0.0
    %105 = vmatpush1.msra.mxu0 0.0
    %106 = vmatprep.subr.mxu0 0.0
    %107 = vmatpush1.msra.mxu0 0.0
    %108 = vmatprep.subr.mxu0 0.0
    %109 = vmatpush1.msra.mxu0 0.0
    %110 = vmatprep.subr.mxu0 0.0
    %111 = vmatpush1.msra.mxu0 0.0
    %112 = vmatprep.subr.mxu0 0.0
    %113 = vmatpush1.msra.mxu0 0.0
    %114 = vmatprep.subr.mxu0 0.0
    %115 = vmatpush1.msra.mxu0 0.0
    %116 = vmatprep.subr.mxu0 0.0
    %117 = vmatpush1.msra.mxu0 0.0
    %118 = vmatprep.subr.mxu0 0.0
    %119 = vmatpush1.msra.mxu0 0.0
    %120 = vmatprep.subr.mxu0 0.0
    %121 = vmatpush1.msra.mxu0 0.0
    %122 = vmatprep.subr.mxu0 0.0
    %123 = vmatpush1.msra.mxu0 0.0
    %124 = vmatprep.subr.mxu0 0.0
    %125 = vmatpush1.msra.mxu0 0.0
    %126 = vmatprep.subr.mxu0 0.0
    %127 = vmatpush1.msra.mxu0 0.0
    %128 = vmatprep.subr.mxu0 0.0
    %129 = vmatpush1.msra.mxu0 0.0
    %130 = vmatprep.subr.mxu0 0.0
    %131 = vmatpush1.msra.mxu0 0.0
    %132 = vmatprep.mubr.f32.mxu0 0.0
    %133 = vmatmul.mubr.f32.gmra.mrb[0].mxu0 %v66
    %v134 = vpop.f32.mrb[0].mxu0
    %v135 = vadd.f32 %v63, %v134
    %v136 = vpop.f32.mrb[0].mxu0
    %137 = vdwg.mxu0
    %v138 = vadd.f32 %v135, %v37
    %139 = vst.msk [vmem:[#allocation5] sm:$0xff] %vm28, %v138
    // Predicated region
    $region18: #{tpu_custom_call.1} parent=1 // pred_check
      _
    $region19: #{tpu_custom_call.1} parent=1 // pred_check_branch
      %141 = sbr.rel (0) target = $region21
    $region20: #{tpu_custom_call.1} parent=1 // pred_region
      %s143 = ssub.s32 128, 128
      %144 = vsyncadd [#allocation4], %s143
      %s146 = sshll.u32 [#allocation5], 4
      %s147 = int_to_ptr.vmem [resolvable:$true] %s146
      %149 = dma.vmem_to_hbm [thread:$0]  %s147, 128, %s3, [#allocation4]
    $region21: #{tpu_custom_call.1} parent=1 // pred_fallthru
      _
    // Predicated region
    $region22: #{tpu_custom_call.1} parent=1 // pred_check
      _
    $region23: #{tpu_custom_call.1} parent=1 // pred_check_branch
      %151 = sbr.rel (0) target = $region25
    $region24: #{tpu_custom_call.1} parent=1 // pred_region
      %152 = dma.done [#allocation4], 128
    $region25: #{tpu_custom_call.1} parent=1 // pred_fallthru
      _
    %153 = vsyncpa [#allocation3], 1
    %154 = vsyncpa [#allocation4], 1

</llo_original>
